<compile_context>
chip_gen: v7x
topology: tpu7x:2x2x1
jax: 0.10.0
libtpu: 0.0.40
codegen_flags: <defaults>
</compile_context>

<pallas_src>
import math
from functools import partial

import jax
import jax.numpy as jnp
from jax import lax
from jax.experimental import pallas as pl
from jax.experimental.pallas import tpu as pltpu


# --------------------------------------------------------------------------- #
# Linear projection: y = x @ W^T + b
# --------------------------------------------------------------------------- #
def _linear_kernel(x_ref, w_ref, b_ref, o_ref):
    # x_ref: (tm, d_in)  w_ref: (d_in, d_out)  b_ref: (1, d_out)  o_ref: (tm, d_out)
    acc = jnp.dot(x_ref[...], w_ref[...], preferred_element_type=jnp.float32)
    o_ref[...] = (acc + b_ref[...]).astype(o_ref.dtype)


def linear_forward(x2, weight, bias, *, tm=256):
    """x2: (M, d_in); weight: (d_out, d_in) [PyTorch layout]; bias: (d_out,)."""
    M, d_in = x2.shape
    d_out = weight.shape[0]

    # Large, 8-aligned row tile; pad rows instead of asserting divisibility.
    tm_eff = min(tm, max(8, pl.cdiv(M, 8) * 8))
    Mp = pl.cdiv(M, tm_eff) * tm_eff
    if Mp != M:
        x2 = jnp.pad(x2, ((0, Mp - M), (0, 0)))

    w_t = weight.T                    # (d_in, d_out): feature dim on lanes
    b2 = bias.reshape(1, d_out)

    cost = pl.CostEstimate(
        flops=2 * Mp * d_in * d_out,
        transcendentals=0,
        bytes_accessed=4 * (Mp * d_in + d_in * d_out + Mp * d_out),
    )

    out = pl.pallas_call(
        _linear_kernel,
        out_shape=jax.ShapeDtypeStruct((Mp, d_out), x2.dtype),
        grid_spec=pltpu.PrefetchScalarGridSpec(
            num_scalar_prefetch=0,
            grid=(Mp // tm_eff,),
            in_specs=[
                pl.BlockSpec((tm_eff, d_in), lambda i: (i, 0)),
                pl.BlockSpec((d_in, d_out), lambda i: (0, 0)),   # grid-invariant
                pl.BlockSpec((1, d_out), lambda i: (0, 0)),      # grid-invariant
            ],
            out_specs=pl.BlockSpec((tm_eff, d_out), lambda i: (i, 0)),
        ),
        compiler_params=pltpu.CompilerParams(
            dimension_semantics=("parallel",)),
        cost_estimate=cost,
    )(x2, w_t, b2)
    return out[:M]


# --------------------------------------------------------------------------- #
# Scaled-dot-product attention with online softmax (flash-style)
# --------------------------------------------------------------------------- #
def _mha_attention_kernel(q_ref, k_ref, v_ref, b_ref, o_ref,
                          m_sc, l_sc, acc_sc, *, scale):
    # q_ref: (tq, d_k)  k_ref/v_ref: (tk, d_k)  b_ref: (tq, tk)  o_ref: (tq, d_k)
    ki = pl.program_id(3)

    @pl.when(ki == 0)
    def _():
        m_sc[...] = jnp.full_like(m_sc, -jnp.inf)
        l_sc[...] = jnp.zeros_like(l_sc)
        acc_sc[...] = jnp.zeros_like(acc_sc)

    # scores = (q @ k^T) * scale, then masked_fill(mask==0, -1e9) semantics.
    s = lax.dot_general(q_ref[...], k_ref[...],
                        (((1,), (1,)), ((), ())),
                        preferred_element_type=jnp.float32) * scale
    s = jnp.where(b_ref[...] == 0.0, s, b_ref[...])

    m_prev = m_sc[...]
    m_new = jnp.maximum(m_prev, jnp.max(s, axis=-1, keepdims=True))
    alpha = jnp.exp(m_prev - m_new)
    p = jnp.exp(s - m_new)

    l_sc[...] = alpha * l_sc[...] + jnp.sum(p, axis=-1, keepdims=True)
    acc_sc[...] = alpha * acc_sc[...] + jnp.dot(
        p.astype(v_ref.dtype), v_ref[...], preferred_element_type=jnp.float32)
    m_sc[...] = m_new

    @pl.when(ki == pl.num_programs(3) - 1)
    def _():
        o_ref[...] = (acc_sc[...] / l_sc[...]).astype(o_ref.dtype)


def _pick_tile(s, max_tile):
    """Return (padded_len, tile). max_tile must be a multiple of 8 and 128."""
    sp = pl.cdiv(s, 8) * 8
    if sp <= max_tile:
        return sp, sp                   # single tile == full (padded) dim
    sp = pl.cdiv(s, max_tile) * max_tile
    return sp, max_tile


def _attention(q, k, v, bias, *, max_tq=256, max_tk=512):
    """q,k,v: (B, H, S, d_k); bias: (B, Sq, Sk) with 0 (keep) / -1e9 (masked)."""
    B, H, Sq, d_k = q.shape
    Sk = k.shape[2]
    scale = 1.0 / math.sqrt(d_k)

    Sqp, tq = _pick_tile(Sq, max_tq)
    Skp, tk = _pick_tile(Sk, max_tk)

    if Sqp != Sq:
        q = jnp.pad(q, ((0, 0), (0, 0), (0, Sqp - Sq), (0, 0)))
        bias = jnp.pad(bias, ((0, 0), (0, Sqp - Sq), (0, 0)))
    if Skp != Sk:
        k = jnp.pad(k, ((0, 0), (0, 0), (0, Skp - Sk), (0, 0)))
        v = jnp.pad(v, ((0, 0), (0, 0), (0, Skp - Sk), (0, 0)))
        # padded keys are fully masked
        bias = jnp.pad(bias, ((0, 0), (0, 0), (0, Skp - Sk)),
                       constant_values=-1e9)

    grid = (B, H, Sqp // tq, Skp // tk)
    cost = pl.CostEstimate(
        flops=4 * B * H * Sqp * Skp * d_k,         # QK^T + PV
        transcendentals=B * H * Sqp * Skp,         # exp
        bytes_accessed=4 * (B * H * Sqp * d_k + 2 * B * H * Skp * d_k
                            + B * Sqp * Skp + B * H * Sqp * d_k),
    )

    out = pl.pallas_call(
        partial(_mha_attention_kernel, scale=scale),
        out_shape=jax.ShapeDtypeStruct((B, H, Sqp, d_k), q.dtype),
        grid_spec=pltpu.PrefetchScalarGridSpec(
            num_scalar_prefetch=0,
            grid=grid,
            in_specs=[
                pl.BlockSpec((None, None, tq, d_k),
                             lambda b, h, qi, ki: (b, h, qi, 0)),
                pl.BlockSpec((None, None, tk, d_k),
                             lambda b, h, qi, ki: (b, h, ki, 0)),
                pl.BlockSpec((None, None, tk, d_k),
                             lambda b, h, qi, ki: (b, h, ki, 0)),
                pl.BlockSpec((None, tq, tk),
                             lambda b, h, qi, ki: (b, qi, ki)),
            ],
            out_specs=pl.BlockSpec((None, None, tq, d_k),
                                   lambda b, h, qi, ki: (b, h, qi, 0)),
            scratch_shapes=[
                pltpu.VMEM((tq, 1), jnp.float32),    # running max
                pltpu.VMEM((tq, 1), jnp.float32),    # running denominator
                pltpu.VMEM((tq, d_k), jnp.float32),  # output accumulator
            ],
        ),
        compiler_params=pltpu.CompilerParams(
            dimension_semantics=("parallel", "parallel", "parallel", "arbitrary")),
        cost_estimate=cost,
    )(q, k, v, bias)

    return out[:, :, :Sq, :]


# --------------------------------------------------------------------------- #
# Full MultiHeadAttention forward
# --------------------------------------------------------------------------- #
def multi_head_attention_forward(params, query, key, value, mask=None, *, num_heads):
    """params: dict name -> (weight (d_model,d_model), bias (d_model,)) in PyTorch layout."""
    B, Sq, d_model = query.shape
    Sk = key.shape[1]
    assert d_model % num_heads == 0
    d_k = d_model // num_heads

    def proj(x, name):
        w, b = params[name]
        y = linear_forward(x.reshape(-1, d_model), w, b)
        return y.reshape(x.shape[0], x.shape[1], d_model)

    q = proj(query, "q_proj")
    k = proj(key, "k_proj")
    v = proj(value, "v_proj")

    # (B, S, H, d_k) -> (B, H, S, d_k)
    q = q.reshape(B, Sq, num_heads, d_k).transpose(0, 2, 1, 3)
    k = k.reshape(B, Sk, num_heads, d_k).transpose(0, 2, 1, 3)
    v = v.reshape(B, Sk, num_heads, d_k).transpose(0, 2, 1, 3)

    # Additive/replace mask bias: 0 where attend, -1e9 where mask == 0
    # (broadcast over heads, matching the PyTorch view/unsqueeze logic).
    if mask is None:
        bias = jnp.zeros((B, Sq, Sk), jnp.float32)
    else:
        if mask.ndim == 2:                       # (B, Sk)
            mask_b = jnp.broadcast_to(mask.reshape(B, 1, Sk), (B, Sq, Sk))
        elif mask.ndim == 3:                     # (B, Sq, Sk)
            mask_b = mask
        else:
            raise ValueError("mask must be 2D or 3D")
        bias = jnp.where(mask_b == 0, -1e9, 0.0).astype(jnp.float32)

    ctx = _attention(q, k, v, bias)              # (B, H, Sq, d_k)

    x = ctx.transpose(0, 2, 1, 3).reshape(B, Sq, d_model)
    w_o, b_o = params["out_proj"]
    return linear_forward(x.reshape(-1, d_model), w_o, b_o).reshape(B, Sq, d_model)


# --------------------------------------------------------------------------- #
# Pure-JAX reference (mirrors the PyTorch module, eval mode)
# --------------------------------------------------------------------------- #
def reference_mha(query, key, value, params, num_heads, mask=None):
    def lin(x, wb):
        w, b = wb
        return x @ w.T + b

    B, Sq, d_model = query.shape
    Sk = key.shape[1]
    d_k = d_model // num_heads
    q = lin(query, params["q_proj"]).reshape(B, Sq, num_heads, d_k).transpose(0, 2, 1, 3)
    k = lin(key, params["k_proj"]).reshape(B, Sk, num_heads, d_k).transpose(0, 2, 1, 3)
    v = lin(value, params["v_proj"]).reshape(B, Sk, num_heads, d_k).transpose(0, 2, 1, 3)
    scores = jnp.einsum("bhqd,bhkd->bhqk", q, k) / math.sqrt(d_k)
    if mask is not None:
        m = mask.reshape(B, 1, 1, Sk) if mask.ndim == 2 else mask[:, None]
        scores = jnp.where(m == 0, -1e9, scores)
    attn = jax.nn.softmax(scores, axis=-1)
    ctx = jnp.einsum("bhqk,bhkd->bhqd", attn, v)
    x = ctx.transpose(0, 2, 1, 3).reshape(B, Sq, d_model)
    return lin(x, params["out_proj"])


# --------------------------------------------------------------------------- #
if __name__ == "__main__":
    batch, seq, d_model, num_heads = 2, 8, 32, 4

    root = jax.random.PRNGKey(0)
    kq, kk, kv, *pkeys = jax.random.split(root, 11)

    def init_linear(kw, kb, fan_in, fan_out):
        bound = 1.0 / math.sqrt(fan_in)
        w = jax.random.uniform(kw, (fan_out, fan_in), minval=-bound, maxval=bound,
                               dtype=jnp.float32)
        b = jax.random.uniform(kb, (fan_out,), minval=-bound, maxval=bound,
                               dtype=jnp.float32)
        return w, b

    params = {
        "q_proj": init_linear(pkeys[0], pkeys[1], d_model, d_model),
        "k_proj": init_linear(pkeys[2], pkeys[3], d_model, d_model),
        "v_proj": init_linear(pkeys[4], pkeys[5], d_model, d_model),
        "out_proj": init_linear(pkeys[6], pkeys[7], d_model, d_model),
    }

    query = jax.random.normal(kq, (batch, seq, d_model), dtype=jnp.float32)
    key_in = jax.random.normal(kk, (batch, seq, d_model), dtype=jnp.float32)
    value = jax.random.normal(kv, (batch, seq, d_model), dtype=jnp.float32)

    # No-mask forward.
    out = multi_head_attention_forward(params, query, key_in, value, mask=None,
                                       num_heads=num_heads)
    out = jax.block_until_ready(out)
    ref = reference_mha(query, key_in, value, params, num_heads, mask=None)
    assert out.shape == (batch, seq, d_model)
    assert jnp.allclose(out, ref, atol=1e-4, rtol=1e-4), "mismatch vs reference (no mask)"

    # Key-padding-mask forward (2D mask, last 3 keys masked).
    mask = jnp.ones((batch, seq), dtype=jnp.int32).at[:, seq - 3:].set(0)
    out_m = multi_head_attention_forward(params, query, key_in, value, mask=mask,
                                         num_heads=num_heads)
    out_m = jax.block_until_ready(out_m)
    ref_m = reference_mha(query, key_in, value, params, num_heads, mask=mask)
    assert jnp.allclose(out_m, ref_m, atol=1e-4, rtol=1e-4), "mismatch vs reference (masked)"

    print("KERNEL_OK")
</pallas_src>

<mosaic_0001>
module attributes {stable_mosaic.version = 11 : i64} {
  func.func @_linear_kernel(%arg0: i32, %arg1: memref<16x32xf32, #tpu.memory_space<vmem>>, %arg2: memref<32x32xf32, #tpu.memory_space<vmem>>, %arg3: memref<1x32xf32, #tpu.memory_space<vmem>>, %arg4: memref<16x32xf32, #tpu.memory_space<vmem>>) attributes {dimension_semantics = [#tpu.dimension_semantics<parallel>], iteration_bounds = array<i64: 1>, scalar_prefetch = 0 : i64, scratch_operands = 0 : i64, tpu.core_type = #tpu.core_type<tc>, window_params = [{transform_indices = @transform_0, window_bounds = array<i64: 16, 32>}, {pipeline_mode = #tpu.pipeline_mode<synchronous>, transform_indices = @transform_1, window_bounds = array<i64: 32, 32>}, {pipeline_mode = #tpu.pipeline_mode<synchronous>, transform_indices = @transform_2, window_bounds = array<i64: 1, 32>}, {transform_indices = @transform_3, window_bounds = array<i64: 16, 32>}]} {
    %c0 = arith.constant 0 : index
    %c0_0 = arith.constant 0 : index
    %0 = vector.load %arg1[%c0, %c0_0] : memref<16x32xf32, #tpu.memory_space<vmem>>, vector<16x32xf32>
    %c0_1 = arith.constant 0 : index
    %c0_2 = arith.constant 0 : index
    %1 = vector.load %arg2[%c0_1, %c0_2] : memref<32x32xf32, #tpu.memory_space<vmem>>, vector<32x32xf32>
    %cst = arith.constant dense<0.000000e+00> : vector<16x32xf32>
    %2 = tpu.matmul %0, %1, %cst {dimension_numbers = #tpu.dot_dimension_numbers<[1], [0], [0], [1], [0, 0, 1, 1], [], []>} : vector<16x32xf32>, vector<32x32xf32>, vector<16x32xf32> -> vector<16x32xf32>
    %c0_3 = arith.constant 0 : index
    %c0_4 = arith.constant 0 : index
    %3 = vector.load %arg3[%c0_3, %c0_4] : memref<1x32xf32, #tpu.memory_space<vmem>>, vector<1x32xf32>
    %4 = vector.broadcast %3 : vector<1x32xf32> to vector<16x32xf32>
    %5 = arith.addf %2, %4 : vector<16x32xf32>
    %c0_5 = arith.constant 0 : index
    %c0_6 = arith.constant 0 : index
    %6 = vector.load %arg4[%c0_5, %c0_6] : memref<16x32xf32, #tpu.memory_space<vmem>>, vector<16x32xf32>
    tpu.vector_store %arg4[%c0_5, %c0_6], %5 {strides = array<i32>} : memref<16x32xf32, #tpu.memory_space<vmem>>, vector<16x32xf32>,
    return
  }
  func.func @transform_0(%arg0: i32) -> (i32, i32) {
    %c0_i32 = arith.constant 0 : i32
    %c0_i32_0 = arith.constant 0 : i32
    return %arg0, %c0_i32 : i32, i32
  }
  func.func @transform_1(%arg0: i32) -> (i32, i32) {
    %c0_i32 = arith.constant 0 : i32
    %c0_i32_0 = arith.constant 0 : i32
    %c0_i32_1 = arith.constant 0 : i32
    return %c0_i32, %c0_i32_0 : i32, i32
  }
  func.func @transform_2(%arg0: i32) -> (i32, i32) {
    %c0_i32 = arith.constant 0 : i32
    %c0_i32_0 = arith.constant 0 : i32
    %c0_i32_1 = arith.constant 0 : i32
    return %c0_i32, %c0_i32_0 : i32, i32
  }
  func.func @transform_3(%arg0: i32) -> (i32, i32) {
    %c0_i32 = arith.constant 0 : i32
    %c0_i32_0 = arith.constant 0 : i32
    return %arg0, %c0_i32 : i32, i32
  }
}

</mosaic_0001>

<llo_original>
// kernel: tpu_custom_call.1
$region0: #{tpu_custom_call.1}
  #allocation0 [shape = 'u32[]', space=smem, size = 0x4, offset = 0x4, fixed_abs, tag = 'smem constant byte address 0x4 - core index']
  #allocation1 [shape = 'u32[144,128]{1,0:T(1,128)}', space=vmem, size = 0x12000, scoped, tag = 'internal scratch']
  %s0 = inlined_call_operand.hbm [shape: f32[16,32], index: 0, kind: input, shape index: {}]
  %s1 = inlined_call_operand.hbm [shape: f32[32,32], index: 1, kind: input, shape index: {}]
  %s2 = inlined_call_operand.vmem [shape: f32[1,32], index: 2, kind: input, shape index: {}]
  %s3 = inlined_call_operand.hbm [shape: f32[16,32], index: 3, kind: output, shape index: {}]
  %s4 = sld [smem:[#allocation0]]
  $region30: #{tpu_custom_call.1} parent=0
    _
  %s6 = ssub.s32 1, %s4
  %s7 = scalar_select 0, %s6, %s4
  $region1: #{tpu_custom_call.1} parent=0
    #allocation2 [shape = 'u8[8192]{0}', space=vmem, size = 0x2000, scoped, tag = 'input window, operand 0, single buffered']
    #allocation3 [shape = 's32[1]{0}', space=sflag, size = 0x4, scoped, tag = 'scoped memory for tpu_custom_call.1']
    #allocation4 [shape = 's32[1]{0}', space=sflag, size = 0x4, scoped, tag = 'scoped memory for tpu_custom_call.1']
    #allocation5 [shape = 'u8[16384]{0}', space=vmem, size = 0x4000, scoped, tag = 'input window, operand 1, single buffered']
    #allocation6 [shape = 's32[1]{0}', space=sflag, size = 0x4, scoped, tag = 'scoped memory for tpu_custom_call.1']
    #allocation7 [shape = 'u8[8192]{0}', space=vmem, size = 0x2000, scoped, tag = 'output window, operand 0, single buffered']
    %8 = vsyncpa [#allocation3], 0
    %9 = vsyncpa [#allocation6], 0
    %10 = vsyncpa [#allocation4], 0
    // Predicated region
    $region2: #{tpu_custom_call.1} parent=1 // pred_check
      _
    $region3: #{tpu_custom_call.1} parent=1 // pred_check_branch
      %12 = sbr.rel (0) target = $region5
    $region4: #{tpu_custom_call.1} parent=1 // pred_region
      %s14 = ssub.s32 256, 256
      %15 = vsyncadd [#allocation3], %s14
      %s16 = sshll.u32 [#allocation2], 4
      %s17 = int_to_ptr.vmem [resolvable:$true] %s16
      %22 = dma.hbm_to_vmem [thread:$0]  %s0, 256, %s17, [#allocation3], 128, 128, 8
    $region5: #{tpu_custom_call.1} parent=1 // pred_fallthru
      _
    // Predicated region
    $region6: #{tpu_custom_call.1} parent=1 // pred_check
      _
    $region7: #{tpu_custom_call.1} parent=1 // pred_check_branch
      %24 = sbr.rel (0) target = $region9
    $region8: #{tpu_custom_call.1} parent=1 // pred_region
      %s26 = ssub.s32 512, 512
      %27 = vsyncadd [#allocation6], %s26
      %s28 = sshll.u32 [#allocation5], 4
      %s29 = int_to_ptr.vmem [resolvable:$true] %s28
      %34 = dma.hbm_to_vmem [thread:$0]  %s1, 512, %s29, [#allocation6], 128, 128, 8
    $region9: #{tpu_custom_call.1} parent=1 // pred_fallthru
      _
    // Predicated region
    $region10: #{tpu_custom_call.1} parent=1 // pred_check
      _
    $region11: #{tpu_custom_call.1} parent=1 // pred_check_branch
      %36 = sbr.rel (0) target = $region13
    $region12: #{tpu_custom_call.1} parent=1 // pred_region
      _
    $region13: #{tpu_custom_call.1} parent=1 // pred_fallthru
      _
    // Predicated region
    $region14: #{tpu_custom_call.1} parent=1 // pred_check
      _
    $region15: #{tpu_custom_call.1} parent=1 // pred_check_branch
      %38 = sbr.rel (0) target = $region17
    $region16: #{tpu_custom_call.1} parent=1 // pred_region
      %39 = dma.done [#allocation3], 256
    $region17: #{tpu_custom_call.1} parent=1 // pred_fallthru
      _
    // Predicated region
    $region18: #{tpu_custom_call.1} parent=1 // pred_check
      _
    $region19: #{tpu_custom_call.1} parent=1 // pred_check_branch
      %41 = sbr.rel (0) target = $region21
    $region20: #{tpu_custom_call.1} parent=1 // pred_region
      %42 = dma.done [#allocation6], 512
    $region21: #{tpu_custom_call.1} parent=1 // pred_fallthru
      _
    %v43 = vld [vmem:[#allocation2] sm:$0xff]
    %v44 = vld [vmem:[#allocation2 + $0x8] sm:$0xff]
    %v45 = vld [vmem:[#allocation5] sm:$0xff]
    %v46 = vld [vmem:[#allocation5 + $0x8] sm:$0xff]
    %v47 = vld [vmem:[#allocation5 + $0x10] sm:$0xff]
    %v48 = vld [vmem:[#allocation5 + $0x18] sm:$0xff]
    %v49 = vld [vmem:[%s2] sm:$0x1]
    %v51 = vlaneseq
    %v52 = vshrl.u32 %v51, 7
    %v53 = vsub.s32 0, %v52
    %v54 = vrot.slane %v49, %v53
    %vm56 = vcmask 261120
    %v58 = vsel %vm56, %v43, 0
    %v61 = vsel %vm56, %v44, 0
    %63 = vmatprep.subr.mxu0 0.0
    %64 = vmatpush1.msra.mxu0 %v45
    %65 = vmatprep.subr.mxu0 0.0
    %66 = vmatpush1.msra.mxu0 %v46
    %67 = vmatprep.subr.mxu0 0.0
    %68 = vmatpush1.msra.mxu0 %v47
    %69 = vmatprep.subr.mxu0 0.0
    %70 = vmatpush1.msra.mxu0 %v48
    %71 = vmatprep.subr.mxu0 0.0
    %72 = vmatpush1.msra.mxu0 0.0
    %73 = vmatprep.subr.mxu0 0.0
    %74 = vmatpush1.msra.mxu0 0.0
    %75 = vmatprep.subr.mxu0 0.0
    %76 = vmatpush1.msra.mxu0 0.0
    %77 = vmatprep.subr.mxu0 0.0
    %78 = vmatpush1.msra.mxu0 0.0
    %79 = vmatprep.subr.mxu0 0.0
    %80 = vmatpush1.msra.mxu0 0.0
    %81 = vmatprep.subr.mxu0 0.0
    %82 = vmatpush1.msra.mxu0 0.0
    %83 = vmatprep.subr.mxu0 0.0
    %84 = vmatpush1.msra.mxu0 0.0
    %85 = vmatprep.subr.mxu0 0.0
    %86 = vmatpush1.msra.mxu0 0.0
    %87 = vmatprep.subr.mxu0 0.0
    %88 = vmatpush1.msra.mxu0 0.0
    %89 = vmatprep.subr.mxu0 0.0
    %90 = vmatpush1.msra.mxu0 0.0
    %91 = vmatprep.subr.mxu0 0.0
    %92 = vmatpush1.msra.mxu0 0.0
    %93 = vmatprep.subr.mxu0 0.0
    %94 = vmatpush1.msra.mxu0 0.0
    %95 = vmatprep.subr.mxu0 0.0
    %96 = vmatpush1.msra.mxu0 0.0
    %97 = vmatprep.subr.mxu0 0.0
    %98 = vmatpush1.msra.mxu0 0.0
    %99 = vmatprep.subr.mxu0 0.0
    %100 = vmatpush1.msra.mxu0 0.0
    %101 = vmatprep.subr.mxu0 0.0
    %102 = vmatpush1.msra.mxu0 0.0
    %103 = vmatprep.subr.mxu0 0.0
    %104 = vmatpush1.msra.mxu0 0.0
    %105 = vmatprep.subr.mxu0 0.0
    %106 = vmatpush1.msra.mxu0 0.0
    %107 = vmatprep.subr.mxu0 0.0
    %108 = vmatpush1.msra.mxu0 0.0
    %109 = vmatprep.subr.mxu0 0.0
    %110 = vmatpush1.msra.mxu0 0.0
    %111 = vmatprep.subr.mxu0 0.0
    %112 = vmatpush1.msra.mxu0 0.0
    %113 = vmatprep.subr.mxu0 0.0
    %114 = vmatpush1.msra.mxu0 0.0
    %115 = vmatprep.subr.mxu0 0.0
    %116 = vmatpush1.msra.mxu0 0.0
    %117 = vmatprep.subr.mxu0 0.0
    %118 = vmatpush1.msra.mxu0 0.0
    %119 = vmatprep.subr.mxu0 0.0
    %120 = vmatpush1.msra.mxu0 0.0
    %121 = vmatprep.subr.mxu0 0.0
    %122 = vmatpush1.msra.mxu0 0.0
    %123 = vmatprep.subr.mxu0 0.0
    %124 = vmatpush1.msra.mxu0 0.0
    %125 = vmatprep.subr.mxu0 0.0
    %126 = vmatpush1.msra.mxu0 0.0
    %127 = vmatprep.mubr.f32.mxu0 0.0
    %128 = vmatmul.mubr.f32.gmra.mrb[0].mxu0 %v58
    %v129 = vpop.f32.mrb[0].mxu0
    %v130 = vadd.f32 %v54, %v129
    %v131 = vpop.f32.mrb[0].mxu0
    %132 = vmatprep.mubr.f32.mxu0 0.0
    %133 = vmatmul.mubr.f32.gmra.mrb[0].mxu0 %v61
    %v134 = vpop.f32.mrb[0].mxu0
    %v135 = vadd.f32 %v54, %v134
    %v136 = vpop.f32.mrb[0].mxu0
    %137 = vdwg.mxu0
    %138 = vst.msk [vmem:[#allocation7] sm:$0xff] %vm56, %v130
    %139 = vst.msk [vmem:[#allocation7 + $0x8] sm:$0xff] %vm56, %v135
    // Predicated region
    $region22: #{tpu_custom_call.1} parent=1 // pred_check
      _
    $region23: #{tpu_custom_call.1} parent=1 // pred_check_branch
      %141 = sbr.rel (0) target = $region25
    $region24: #{tpu_custom_call.1} parent=1 // pred_region
      %s143 = ssub.s32 256, 256
      %144 = vsyncadd [#allocation4], %s143
      %s145 = sshll.u32 [#allocation7], 4
      %s146 = int_to_ptr.vmem [resolvable:$true] %s145
      %151 = dma.vmem_to_hbm [thread:$0]  %s146, 256, %s3, [#allocation4], 128, 128, 8
    $region25: #{tpu_custom_call.1} parent=1 // pred_fallthru
      _
    // Predicated region
    $region26: #{tpu_custom_call.1} parent=1 // pred_check
      _
    $region27: #{tpu_custom_call.1} parent=1 // pred_check_branch
      %153 = sbr.rel (0) target = $region29
    $region28: #{tpu_custom_call.1} parent=1 // pred_region
      %154 = dma.done [#allocation4], 256
    $region29: #{tpu_custom_call.1} parent=1 // pred_fallthru
      _
    %155 = vsyncpa [#allocation3], 1
    %156 = vsyncpa [#allocation6], 1
    %157 = vsyncpa [#allocation4], 1

</llo_original>
